<compile_context>
chip_gen: v7x
topology: tpu7x:2x2x1
jax: 0.10.0
libtpu: 0.0.40
codegen_flags: <defaults>
</compile_context>

<pallas_src>
import jax
import jax.numpy as jnp
from jax.experimental import pallas as pl
from jax.experimental.pallas import tpu as pltpu


def _round_up(x: int, m: int) -> int:
    return ((x + m - 1) // m) * m


def awe_kernel(ids_ref, emb_ref, out_ref, acc_ref, invlen_ref):
    """Grid = (batch tiles, vocab tiles); vocab is the reduction axis (last)."""
    k = pl.program_id(1)
    nv = pl.num_programs(1)

    ids = ids_ref[...]                              # (tb, T) int32
    tb, T = ids.shape
    tv = emb_ref.shape[0]

    @pl.when(k == 0)
    def _init():
        acc_ref[...] = jnp.zeros_like(acc_ref)
        # lengths = index of first 0 token, or T if there is none.
        # Computed once per batch tile (hoisted out of the vocab loop).
        t_iota = jax.lax.broadcasted_iota(jnp.int32, (tb, T), 1)
        lengths = jnp.min(jnp.where(ids == 0, t_iota, T), axis=1, keepdims=True)
        # NOTE: matches reference semantics (all-pad row -> divide by zero).
        # approx=False keeps bit-tight accuracy for the test; use approx=True
        # (EUP slot, effectively free) in production.
        invlen_ref[...] = pl.reciprocal(lengths.astype(jnp.float32), approx=False)

    # counts[b, j] = #occurrences of global vocab id (k*tv + j) in row b.
    # (For large T, chunk this compare; demo shapes keep the (tb,T,tv) bool
    #  intermediate tiny.)
    v0 = k * tv
    v_ids = v0 + jax.lax.broadcasted_iota(jnp.int32, (1, 1, tv), 2)          # (1,1,tv)
    counts = jnp.sum((ids[:, :, None] == v_ids).astype(jnp.float32), axis=1)  # (tb,tv)

    # Embedding-sum contribution of this vocab tile: (tb,tv) @ (tv,D_pad) on MXU.
    # (Counts <= T are exact in bf16 -> cast both operands to bf16 here for the
    #  256x256 MXU path on v6e/v7x if the precision budget allows.)
    acc_ref[...] += jnp.dot(counts, emb_ref[...],
                            preferred_element_type=jnp.float32)

    @pl.when(k == nv - 1)
    def _finalize():
        out_ref[...] = (acc_ref[...] * invlen_ref[...]).astype(out_ref.dtype)


def awe_forward(ids, emb, *, v_tile=None, vmem_limit_bytes=32 * 1024 * 1024):
    """ids: (B, T) int32, emb: (V, D) float32 -> (B, D) float32."""
    B, T = ids.shape
    V, D = emb.shape

    # Lane/sublane-dense padding: D -> multiple of 128 (lanes), B -> multiple
    # of the batch tile (>= 8 sublanes).
    D_pad = _round_up(D, 128)
    tb = 8 if B <= 8 else 128
    B_pad = _round_up(B, tb)

    # Size the double-buffered E tile from a VMEM budget (~8 MiB here; raise
    # on v5e/v6e, keep ~half of that headroom on v7x's 64 MiB VMEM).
    if v_tile is None:
        v_tile = (8 * 1024 * 1024) // (2 * D_pad * 4)
        v_tile = max(8, min(2048, (v_tile // 8) * 8))
    v_tile = min(v_tile, _round_up(V, 8))
    V_pad = _round_up(V, v_tile)

    ids_p = jnp.zeros((B_pad, T), dtype=jnp.int32).at[:B].set(ids.astype(jnp.int32))
    emb_p = jnp.zeros((V_pad, D_pad), dtype=emb.dtype).at[:V, :D].set(emb)

    nb = B_pad // tb
    nv = V_pad // v_tile

    out = pl.pallas_call(
        awe_kernel,
        out_shape=jax.ShapeDtypeStruct((B_pad, D_pad), emb.dtype),
        grid_spec=pltpu.PrefetchScalarGridSpec(
            num_scalar_prefetch=0,
            grid=(nb, nv),
            in_specs=[
                pl.BlockSpec((tb, T), lambda b, k: (b, 0)),          # token ids
                pl.BlockSpec((v_tile, D_pad), lambda b, k: (k, 0)),  # E tile (streamed)
            ],
            out_specs=pl.BlockSpec((tb, D_pad), lambda b, k: (b, 0)),
            scratch_shapes=[
                pltpu.VMEM((tb, D_pad), jnp.float32),   # accumulator
                pltpu.VMEM((tb, 1), jnp.float32),       # 1 / lengths
            ],
        ),
        compiler_params=pltpu.CompilerParams(
            dimension_semantics=("parallel", "arbitrary"),
            vmem_limit_bytes=vmem_limit_bytes,
        ),
    )(ids_p, emb_p)

    return out[:B, :D]


def awe_reference(ids, emb):
    """Pure-JAX reference mirroring the PyTorch forward."""
    B, T = ids.shape
    padded = jnp.concatenate([ids, jnp.zeros((B, 1), dtype=ids.dtype)], axis=1)
    lengths = jnp.argmin(padded, axis=1)
    out = emb[ids]                       # (B, T, D)
    return out.sum(axis=1) / lengths[:, None].astype(emb.dtype)


if __name__ == "__main__":
    B, T = 2, 8
    V, D = 512, 32   # small synthetic vocab / dim (GloVe would be V~400k, D=300)

    key = jax.random.PRNGKey(0)
    k_emb, k_ids = jax.random.split(key)

    # Synthetic embedding table; row 0 is the PAD row (all zeros), matching
    # W_pad in load_glove_embeddings.
    emb = jax.random.normal(k_emb, (V, D), dtype=jnp.float32)
    emb = emb.at[0].set(0.0)

    # Token ids in [1, V); zero-pad the tail of sentence 0.
    ids = jax.random.randint(k_ids, (B, T), 1, V, dtype=jnp.int32)
    sent_lengths = jnp.array([[5], [T]], dtype=jnp.int32)   # sentence 0 has padding
    mask = jnp.arange(T, dtype=jnp.int32)[None, :] < sent_lengths
    ids = jnp.where(mask, ids, 0)

    # v_tile=128 -> 4 vocab tiles, exercising the pipelined reduction path.
    out = awe_forward(ids, emb, v_tile=128)
    out = jax.block_until_ready(out)

    ref = awe_reference(ids, emb)
    assert out.shape == (B, D)
    assert jnp.allclose(out, ref, atol=1e-5, rtol=1e-5), "mismatch vs reference"

    print("KERNEL_OK")
</pallas_src>

<mosaic_0001>
module attributes {stable_mosaic.version = 11 : i64} {
  func.func @awe_kernel(%arg0: i32, %arg1: i32, %arg2: memref<8x8xi32, #tpu.memory_space<vmem>>, %arg3: memref<128x128xf32, #tpu.memory_space<vmem>>, %arg4: memref<8x128xf32, #tpu.memory_space<vmem>>, %arg5: memref<8x128xf32, #tpu.memory_space<vmem>>, %arg6: memref<8x1xf32, #tpu.memory_space<vmem>>) attributes {dimension_semantics = [#tpu.dimension_semantics<parallel>, #tpu.dimension_semantics<arbitrary>], iteration_bounds = array<i64: 1, 4>, scalar_prefetch = 0 : i64, scratch_operands = 2 : i64, tpu.core_type = #tpu.core_type<tc>, window_params = [{transform_indices = @transform_0, window_bounds = array<i64: 8, 8>}, {transform_indices = @transform_1, window_bounds = array<i64: 128, 128>}, {transform_indices = @transform_2, window_bounds = array<i64: 8, 128>}]} {
    %c0 = arith.constant 0 : index
    %c0_0 = arith.constant 0 : index
    %0 = vector.load %arg2[%c0, %c0_0] : memref<8x8xi32, #tpu.memory_space<vmem>>, vector<8x8xi32>
    %c0_i32 = arith.constant 0 : i32
    %1 = arith.cmpi eq, %arg1, %c0_i32 : i32
    %2 = arith.extui %1 : i1 to i32
    %c0_i32_1 = arith.constant 0 : i32
    %3 = arith.cmpi ne, %2, %c0_i32_1 : i32
    scf.if %3 {
      %cst_10 = arith.constant 0.000000e+00 : f32
      %23 = vector.broadcast %cst_10 : f32 to vector<8x128xf32>
      %c0_11 = arith.constant 0 : index
      %c0_12 = arith.constant 0 : index
      %24 = vector.load %arg5[%c0_11, %c0_12] : memref<8x128xf32, #tpu.memory_space<vmem>>, vector<8x128xf32>
      tpu.vector_store %arg5[%c0_11, %c0_12], %23 {strides = array<i32>} : memref<8x128xf32, #tpu.memory_space<vmem>>, vector<8x128xf32>,
      %25 = tpu.iota {dimensions = array<i32: 1>} : vector<8x8xi32>
      %c0_i32_13 = arith.constant 0 : i32
      %26 = vector.broadcast %c0_i32_13 : i32 to vector<8x8xi32>
      %27 = arith.cmpi eq, %0, %26 : vector<8x8xi32>
      %c8_i32 = arith.constant 8 : i32
      %28 = vector.broadcast %c8_i32 : i32 to vector<8x8xi32>
      %29 = arith.select %27, %25, %28 : vector<8x8xi1>, vector<8x8xi32>
      %cst_14 = arith.constant dense<2147483647> : vector<8xi32>
      %30 = vector.multi_reduction <minsi>, %29, %cst_14 [1] : vector<8x8xi32> to vector<8xi32>
      %31 = vector.shape_cast %30 : vector<8xi32> to vector<8x1xi32>
      %32 = arith.sitofp %31 : vector<8x1xi32> to vector<8x1xf32>
      %33 = tpu.reciprocal %32 : vector<8x1xf32> -> vector<8x1xf32>
      %c0_15 = arith.constant 0 : index
      %c0_16 = arith.constant 0 : index
      %34 = vector.load %arg6[%c0_15, %c0_16] : memref<8x1xf32, #tpu.memory_space<vmem>>, vector<8x1xf32>
      tpu.vector_store %arg6[%c0_15, %c0_16], %33 {strides = array<i32>} : memref<8x1xf32, #tpu.memory_space<vmem>>, vector<8x1xf32>,
    } else {
    }
    %c128_i32 = arith.constant 128 : i32
    %4 = arith.muli %arg1, %c128_i32 : i32
    %5 = tpu.iota {dimensions = array<i32: 2>} : vector<1x1x128xi32>
    %6 = vector.broadcast %4 : i32 to vector<1x1x128xi32>
    %7 = arith.addi %6, %5 : vector<1x1x128xi32>
    %8 = vector.shape_cast %0 : vector<8x8xi32> to vector<8x8x1xi32>
    %9 = vector.broadcast %8 : vector<8x8x1xi32> to vector<8x8x128xi32>
    %10 = vector.broadcast %7 : vector<1x1x128xi32> to vector<8x8x128xi32>
    %11 = arith.cmpi eq, %9, %10 : vector<8x8x128xi32>
    %12 = arith.extui %11 : vector<8x8x128xi1> to vector<8x8x128xi32>
    %13 = arith.sitofp %12 : vector<8x8x128xi32> to vector<8x8x128xf32>
    %cst = arith.constant dense<0.000000e+00> : vector<8x128xf32>
    %14 = vector.multi_reduction <add>, %13, %cst [1] : vector<8x8x128xf32> to vector<8x128xf32>
    %c0_2 = arith.constant 0 : index
    %c0_3 = arith.constant 0 : index
    %15 = vector.load %arg5[%c0_2, %c0_3] : memref<8x128xf32, #tpu.memory_space<vmem>>, vector<8x128xf32>
    %c0_4 = arith.constant 0 : index
    %c0_5 = arith.constant 0 : index
    %16 = vector.load %arg3[%c0_4, %c0_5] : memref<128x128xf32, #tpu.memory_space<vmem>>, vector<128x128xf32>
    %cst_6 = arith.constant dense<0.000000e+00> : vector<8x128xf32>
    %17 = tpu.matmul %14, %16, %cst_6 {dimension_numbers = #tpu.dot_dimension_numbers<[1], [0], [0], [1], [0, 0, 1, 1], [], []>} : vector<8x128xf32>, vector<128x128xf32>, vector<8x128xf32> -> vector<8x128xf32>
    %18 = arith.addf %15, %17 : vector<8x128xf32>
    %c0_7 = arith.constant 0 : index
    %c0_8 = arith.constant 0 : index
    %19 = vector.load %arg5[%c0_7, %c0_8] : memref<8x128xf32, #tpu.memory_space<vmem>>, vector<8x128xf32>
    tpu.vector_store %arg5[%c0_7, %c0_8], %18 {strides = array<i32>} : memref<8x128xf32, #tpu.memory_space<vmem>>, vector<8x128xf32>,
    %c3_i32 = arith.constant 3 : i32
    %20 = arith.cmpi eq, %arg1, %c3_i32 : i32
    %21 = arith.extui %20 : i1 to i32
    %c0_i32_9 = arith.constant 0 : i32
    %22 = arith.cmpi ne, %21, %c0_i32_9 : i32
    scf.if %22 {
      %c0_10 = arith.constant 0 : index
      %c0_11 = arith.constant 0 : index
      %23 = vector.load %arg5[%c0_10, %c0_11] : memref<8x128xf32, #tpu.memory_space<vmem>>, vector<8x128xf32>
      %c0_12 = arith.constant 0 : index
      %c0_13 = arith.constant 0 : index
      %24 = vector.load %arg6[%c0_12, %c0_13] : memref<8x1xf32, #tpu.memory_space<vmem>>, vector<8x1xf32>
      %25 = vector.broadcast %24 : vector<8x1xf32> to vector<8x128xf32>
      %26 = arith.mulf %23, %25 : vector<8x128xf32>
      %c0_14 = arith.constant 0 : index
      %c0_15 = arith.constant 0 : index
      %27 = vector.load %arg4[%c0_14, %c0_15] : memref<8x128xf32, #tpu.memory_space<vmem>>, vector<8x128xf32>
      tpu.vector_store %arg4[%c0_14, %c0_15], %26 {strides = array<i32>} : memref<8x128xf32, #tpu.memory_space<vmem>>, vector<8x128xf32>,
    } else {
    }
    return
  }
  func.func @transform_0(%arg0: i32, %arg1: i32) -> (i32, i32) {
    %c0_i32 = arith.constant 0 : i32
    %c0_i32_0 = arith.constant 0 : i32
    return %arg0, %c0_i32 : i32, i32
  }
  func.func @transform_1(%arg0: i32, %arg1: i32) -> (i32, i32) {
    %c0_i32 = arith.constant 0 : i32
    %c0_i32_0 = arith.constant 0 : i32
    return %arg1, %c0_i32 : i32, i32
  }
  func.func @transform_2(%arg0: i32, %arg1: i32) -> (i32, i32) {
    %c0_i32 = arith.constant 0 : i32
    %c0_i32_0 = arith.constant 0 : i32
    return %arg0, %c0_i32 : i32, i32
  }
}

</mosaic_0001>

<llo_original>
// kernel: tpu_custom_call.1
$region0: #{tpu_custom_call.1}
  #allocation0 [shape = 'u32[]', space=smem, size = 0x4, offset = 0x4, fixed_abs, tag = 'smem constant byte address 0x4 - core index']
  #allocation1 [shape = 'u32[144,128]{1,0:T(1,128)}', space=vmem, size = 0x12000, scoped, tag = 'internal scratch']
  #allocation2 [shape = 'f32[8,128]{1,0:T(8,128)}', space=vmem, size = 0x1000, scoped, tag = 'scratch operand']
  #allocation3 [shape = 'f32[8,1]{1,0:T(8,128)}', space=vmem, size = 0x1000, scoped, tag = 'scratch operand']
  %s0 = inlined_call_operand.hbm [shape: s32[8,8], index: 0, kind: input, shape index: {}]
  %s1 = inlined_call_operand.hbm [shape: f32[512,128], index: 1, kind: input, shape index: {}]
  %s2 = inlined_call_operand.hbm [shape: f32[8,128], index: 2, kind: output, shape index: {}]
  %s3 = sld [smem:[#allocation0]]
  $region57: #{tpu_custom_call.1} parent=0
    _
  %s5 = ssub.s32 1, %s3
  %s6 = scalar_select 0, %s5, %s3
  $region1: #{tpu_custom_call.1} parent=0
    #allocation4 [shape = 'u8[4096]{0}', space=vmem, size = 0x1000, scoped, tag = 'input window, operand 0, single buffered']
    #allocation5 [shape = 's32[2]{0}', space=sflag, size = 0x8, scoped, tag = 'scoped memory for tpu_custom_call.1']
    #allocation6 [shape = 's32[2]{0}', space=sflag, size = 0x8, scoped, tag = 'scoped memory for tpu_custom_call.1']
    #allocation7 [shape = 'u8[131072]{0}', space=vmem, size = 0x20000, scoped, tag = 'input window, operand 1']
    #allocation8 [shape = 's32[2]{0}', space=sflag, size = 0x8, scoped, tag = 'scoped memory for tpu_custom_call.1']
    #allocation9 [shape = 'u8[4096]{0}', space=vmem, size = 0x1000, scoped, tag = 'output window, operand 0, single buffered']
    %7 = vsyncpa [#allocation5], 0
    %8 = vsyncpa [#allocation8], 0
    %s9 = scalar_lea.sflag [#allocation8], 1
    %10 = vsyncpa %s9, 0
    %11 = vsyncpa [#allocation6], 0
    loop: start=0, step=1, limit=6
    $region2: #{tpu_custom_call.1} parent=1 // loop_pre_header
      _
    $region3: #{tpu_custom_call.1} parent=1 // loop_header
      %s13 = sphi 0, %s17
      %p14 = scmp.ge.s32.totalorder %s13, 6
      %s20 = sphi 0, %s32
      %s21 = sphi 0, %s28
      %s22 = sphi 0, %s20
      %s23 = sphi 0, %s21
      %s24 = sphi 0, %s22
      %s25 = sphi 0, %s23
      %s35 = sphi 0, %s37
      %s38 = sphi 0, %s35
      %s39 = sphi 0, %s38
      %s55 = sphi 0, %s39
      %s61 = sphi 0, %s63
      %s64 = sphi 0, %s61
      %s65 = sphi 0, %s64
      %s81 = sphi 0, %s65
      %s87 = sphi 0, %s89
      %s90 = sphi 0, %s87
      %s91 = sphi 0, %s90
      %s107 = sphi 0, %s91
    $region4: #{tpu_custom_call.1} parent=1 // loop_header_branch
      %16 = sbr.rel (%p14) target = $region8
    $region5: #{tpu_custom_call.1} parent=1 // loop_body
      %s18 = ssub.s32 %s13, 1
      %s19 = ssub.s32 %s13, 2
      %s26 = sadd.s32 1, %s21
      %p27 = scmp.ge.s32.totalorder %s26, 4
      %s28 = scalar_select %p27, 0, %s26
      %s29 = sadd.s32 1, %s20
      %s30 = scalar_select %p27, %s29, %s20
      %p31 = scmp.ge.s32.totalorder %s30, 1
      %s32 = scalar_select %p31, 0, %s30
      %s33 = ssub.s32 %s20, %s32
      %p34 = scmp.eq.s32.totalorder %s33, 0
      %s36 = sadd.s32 %s35, 1
      %s37 = scalar_select %p34, %s35, %s36
      %p40 = pneg %p34
      %p41 = scmp.eq.s32.totalorder %s13, 3
      %p42 = por %p40, %p41
      %p43 = scmp.ne.s32.totalorder %s35, %s38
      %p44 = scmp.eq.s32.totalorder %s13, 0
      %p45 = por %p43, %p44
      %p46 = scmp.ne.s32.totalorder %s35, %s38
      %p47 = scmp.eq.s32.totalorder %s18, 3
      %p48 = por %p46, %p47
      %p49 = scmp.ne.s32.totalorder %s38, %s39
      %p50 = scmp.eq.s32.totalorder %s18, 0
      %p51 = por %p49, %p50
      %p52 = scmp.ne.s32.totalorder %s38, %s39
      %p53 = scmp.eq.s32.totalorder %s19, 3
      %p54 = por %p52, %p53
      %p56 = scmp.ne.s32.totalorder %s39, %s55
      %p57 = scmp.eq.s32.totalorder %s19, 0
      %p58 = por %p56, %p57
      %s59 = ssub.s32 %s21, %s28
      %p60 = scmp.eq.s32.totalorder %s59, 0
      %s62 = sadd.s32 %s61, 1
      %s63 = scalar_select %p60, %s61, %s62
      %p66 = pneg %p60
      %p67 = scmp.eq.s32.totalorder %s13, 3
      %p68 = por %p66, %p67
      %p69 = scmp.ne.s32.totalorder %s61, %s64
      %p70 = scmp.eq.s32.totalorder %s13, 0
      %p71 = por %p69, %p70
      %p72 = scmp.ne.s32.totalorder %s61, %s64
      %p73 = scmp.eq.s32.totalorder %s18, 3
      %p74 = por %p72, %p73
      %p75 = scmp.ne.s32.totalorder %s64, %s65
      %p76 = scmp.eq.s32.totalorder %s18, 0
      %p77 = por %p75, %p76
      %p78 = scmp.ne.s32.totalorder %s64, %s65
      %p79 = scmp.eq.s32.totalorder %s19, 3
      %p80 = por %p78, %p79
      %p82 = scmp.ne.s32.totalorder %s65, %s81
      %p83 = scmp.eq.s32.totalorder %s19, 0
      %p84 = por %p82, %p83
      %s85 = ssub.s32 %s20, %s32
      %p86 = scmp.eq.s32.totalorder %s85, 0
      %s88 = sadd.s32 %s87, 1
      %s89 = scalar_select %p86, %s87, %s88
      %p92 = pneg %p86
      %p93 = scmp.eq.s32.totalorder %s13, 3
      %p94 = por %p92, %p93
      %p95 = scmp.ne.s32.totalorder %s87, %s90
      %p96 = scmp.eq.s32.totalorder %s13, 0
      %p97 = por %p95, %p96
      %p98 = scmp.ne.s32.totalorder %s87, %s90
      %p99 = scmp.eq.s32.totalorder %s18, 3
      %p100 = por %p98, %p99
      %p101 = scmp.ne.s32.totalorder %s90, %s91
      %p102 = scmp.eq.s32.totalorder %s18, 0
      %p103 = por %p101, %p102
      %p104 = scmp.ne.s32.totalorder %s90, %s91
      %p105 = scmp.eq.s32.totalorder %s19, 3
      %p106 = por %p104, %p105
      %p108 = scmp.ne.s32.totalorder %s91, %s107
      %p109 = scmp.eq.s32.totalorder %s19, 0
      %p110 = por %p108, %p109
      %p111 = scmp.le.s32.totalorder 1, %s13
      %p112 = scmp.lt.s32.totalorder %s13, 5
      %p113 = pnand %p111, %p112
      %p114 = pneg %p113
      // Predicated region
      $region9: #{tpu_custom_call.1} parent=5 // pred_check
        _
      $region10: #{tpu_custom_call.1} parent=5 // pred_check_branch
        %116 = sbr.rel (%p113) target = $region12
      $region11: #{tpu_custom_call.1} parent=5 // pred_region
        %s117 = ssub.s32 %s13, 1
        // Predicated region
        $region13: #{tpu_custom_call.1} parent=11 // pred_check
          %p118 = pneg %p51
        $region14: #{tpu_custom_call.1} parent=11 // pred_check_branch
          %120 = sbr.rel (%p118) target = $region16
        $region15: #{tpu_custom_call.1} parent=11 // pred_region
          %s122 = ssub.s32 128, 128
          %123 = vsyncadd [#allocation5], %s122
          %s124 = smul.addr %s22, 128
          %s125 = scalar_lea.hbm %s0, %s124
          %s127 = sshll.u32 [#allocation4], 4
          %s128 = int_to_ptr.vmem [resolvable:$true] %s127
          %130 = dma.hbm_to_vmem [thread:$0]  %s125, 128, %s128, [#allocation5]
        $region16: #{tpu_custom_call.1} parent=11 // pred_fallthru
          _
      $region12: #{tpu_custom_call.1} parent=5 // pred_fallthru
        _
      %p131 = scmp.lt.s32.totalorder %s13, 4
      // Predicated region
      $region17: #{tpu_custom_call.1} parent=5 // pred_check
        %p132 = pneg %p131
      $region18: #{tpu_custom_call.1} parent=5 // pred_check_branch
        %134 = sbr.rel (%p132) target = $region20
      $region19: #{tpu_custom_call.1} parent=5 // pred_region
        // Predicated region
        $region21: #{tpu_custom_call.1} parent=19 // pred_check
          %p135 = pneg %p71
        $region22: #{tpu_custom_call.1} parent=19 // pred_check_branch
          %137 = sbr.rel (%p135) target = $region24
        $region23: #{tpu_custom_call.1} parent=19 // pred_region
          %s138 = sand.u32 %s61, 1
          %s139 = scalar_lea.sflag [#allocation8], %s138
          %s140 = sand.u32 %s61, 1
          %s141 = smul.addr %s140, 128
          %s142 = scalar_lea.vmem [#allocation7], %s141
          %s143 = smul.u32 16, %s21
          %s145 = ssub.s32 2048, 2048
          %146 = vsyncadd %s139, %s145
          %s147 = smul.addr %s143, 128
          %s148 = scalar_lea.hbm %s1, %s147
          %s149 = sshll.u32 %s142, 4
          %s150 = int_to_ptr.vmem [resolvable:$true] %s149
          %155 = dma.hbm_to_vmem [thread:$0]  %s148, 2048, %s150, %s139, 128, 128, 8
        $region24: #{tpu_custom_call.1} parent=19 // pred_fallthru
          _
      $region20: #{tpu_custom_call.1} parent=5 // pred_fallthru
        _
      %p156 = scmp.le.s32.totalorder 1, %s13
      %p157 = scmp.lt.s32.totalorder %s13, 5
      %p158 = pnand %p156, %p157
      %p159 = pneg %p158
      // Predicated region
      $region25: #{tpu_custom_call.1} parent=5 // pred_check
        _
      $region26: #{tpu_custom_call.1} parent=5 // pred_check_branch
        %161 = sbr.rel (%p158) target = $region28
      $region27: #{tpu_custom_call.1} parent=5 // pred_region
        %s162 = ssub.s32 %s13, 1
        // Predicated region
        $region29: #{tpu_custom_call.1} parent=27 // pred_check
          %p163 = pneg %p51
        $region30: #{tpu_custom_call.1} parent=27 // pred_check_branch
          %165 = sbr.rel (%p163) target = $region32
        $region31: #{tpu_custom_call.1} parent=27 // pred_region
          %166 = dma.done [#allocation5], 128
        $region32: #{tpu_custom_call.1} parent=27 // pred_fallthru
          _
        %s167 = sand.u32 %s64, 1
        %s168 = scalar_lea.sflag [#allocation8], %s167
        %s169 = sand.u32 %s64, 1
        %s170 = smul.addr %s169, 128
        %s171 = scalar_lea.vmem [#allocation7], %s170
        // Predicated region
        $region33: #{tpu_custom_call.1} parent=27 // pred_check
          %p172 = pneg %p77
        $region34: #{tpu_custom_call.1} parent=27 // pred_check_branch
          %174 = sbr.rel (%p172) target = $region36
        $region35: #{tpu_custom_call.1} parent=27 // pred_region
          %175 = dma.done %s168, 2048
        $region36: #{tpu_custom_call.1} parent=27 // pred_fallthru
          _
        %p176 = pneg %p51
        %p177 = pneg %p48
        %s178 = sand.u32 %s64, 1
        %s179 = scalar_lea.sflag [#allocation8], %s178
        %s180 = sand.u32 %s64, 1
        %s181 = smul.addr %s180, 128
        %s182 = scalar_lea.vmem [#allocation7], %s181
        %p183 = pneg %p77
        %p184 = pneg %p74
        %p185 = pneg %p103
        %p186 = pneg %p100
        %s187 = smul.u32 16, %s23
        %v188 = vld [vmem:[#allocation4] sm:$0xff]
        %p189 = scmp.eq.s32.totalorder %s23, 0
        // Predicated region
        $region37: #{tpu_custom_call.1} parent=27 // pred_check
          %p190 = pneg %p189
        $region38: #{tpu_custom_call.1} parent=27 // pred_check_branch
          %192 = sbr.rel (%p190) target = $region40
        $region39: #{tpu_custom_call.1} parent=27 // pred_region
          %193 = vst [vmem:[#allocation2] sm:$0xff] 0.0
          %v194 = vlaneseq
          %v195 = vand.u32 %v194, 127
          %vm196 = vcmp.eq.s32.totalorder %v188, 0
          %v197 = vsel %vm196, %v195, 8
          %vm198 = vcmask 64512
          %v199 = vsel %vm198, %v197, 2147483647
          %v200 = vand.u32 %v199, 65535
          %v201 = vshra.s32 %v199, 16
          %v202 = vcvt.s32.f32 %v200
          %v203 = vcvt.s32.f32 %v201
          %204 = vmin.xlane.f32.xlu0 %v203
          %v205 = vpop.xlane.xlu0 %204
          %vm206 = vcmp.eq.f32.partialorder %v203, %v205
          %v207 = vsel %vm206, %v202, inf
          %208 = vmin.xlane.f32.xlu0 %v207
          %v209 = vpop.xlane.xlu0 %208
          %v210 = vcvt.f32.s32 %v209
          %v211 = vcvt.f32.s32 %v205
          %v212 = vshll.u32 %v211, 16
          %v213 = vadd.s32 %v212, %v210
          %v214 = vcvt.s32.f32 %v213
          %v215 = vrcp.pop %v214
          %vm216 = vcmask 7168
          %217 = vst.msk [vmem:[#allocation3] sm:$0xff] %vm216, %v215
        $region40: #{tpu_custom_call.1} parent=27 // pred_fallthru
          _
        %s218 = smul.u32 %s23, 128
        %v219 = vlaneseq
        %v220 = vand.u32 %v219, 127
        %v221 = vstv %s218
        %v222 = vadd.s32 %v221, %v220
        %v223 = vlaneseq
        %v224 = vshrl.u32 %v223, 7
        %v225 = vsub.s32 0, %v224
        %v226 = vrot.slane %v188, %v225
        %228 = vbcast.lane.b32.xlu0 %v226, 256
        %v229 = vpop.permute.xlu0 %228
        %v230 = vlaneseq
        %v231 = vshrl.u32 %v230, 7
        %v232 = vsub.s32 1, %v231
        %v233 = vrot.slane %v188, %v232
        %235 = vbcast.lane.b32.xlu0 %v233, 256
        %v236 = vpop.permute.xlu0 %235
        %v237 = vlaneseq
        %v238 = vshrl.u32 %v237, 7
        %v239 = vsub.s32 2, %v238
        %v240 = vrot.slane %v188, %v239
        %242 = vbcast.lane.b32.xlu0 %v240, 256
        %v243 = vpop.permute.xlu0 %242
        %v244 = vlaneseq
        %v245 = vshrl.u32 %v244, 7
        %v246 = vsub.s32 3, %v245
        %v247 = vrot.slane %v188, %v246
        %249 = vbcast.lane.b32.xlu0 %v247, 256
        %v250 = vpop.permute.xlu0 %249
        %v251 = vlaneseq
        %v252 = vshrl.u32 %v251, 7
        %v253 = vsub.s32 4, %v252
        %v254 = vrot.slane %v188, %v253
        %256 = vbcast.lane.b32.xlu0 %v254, 256
        %v257 = vpop.permute.xlu0 %256
        %v258 = vlaneseq
        %v259 = vshrl.u32 %v258, 7
        %v260 = vsub.s32 5, %v259
        %v261 = vrot.slane %v188, %v260
        %263 = vbcast.lane.b32.xlu0 %v261, 256
        %v264 = vpop.permute.xlu0 %263
        %v265 = vlaneseq
        %v266 = vshrl.u32 %v265, 7
        %v267 = vsub.s32 6, %v266
        %v268 = vrot.slane %v188, %v267
        %270 = vbcast.lane.b32.xlu0 %v268, 256
        %v271 = vpop.permute.xlu0 %270
        %v272 = vlaneseq
        %v273 = vshrl.u32 %v272, 7
        %v274 = vsub.s32 7, %v273
        %v275 = vrot.slane %v188, %v274
        %277 = vbcast.lane.b32.xlu0 %v275, 256
        %v278 = vpop.permute.xlu0 %277
        %vm279 = vcmp.eq.s32.totalorder %v229, %v222
        %vm280 = vcmp.eq.s32.totalorder %v236, %v222
        %vm281 = vcmp.eq.s32.totalorder %v243, %v222
        %vm282 = vcmp.eq.s32.totalorder %v250, %v222
        %vm283 = vcmp.eq.s32.totalorder %v257, %v222
        %vm284 = vcmp.eq.s32.totalorder %v264, %v222
        %vm285 = vcmp.eq.s32.totalorder %v271, %v222
        %vm286 = vcmp.eq.s32.totalorder %v278, %v222
        %v287 = vsel %vm279, 1, 0
        %v288 = vsel %vm280, 1, 0
        %v289 = vsel %vm281, 1, 0
        %v290 = vsel %vm282, 1, 0
        %v291 = vsel %vm283, 1, 0
        %v292 = vsel %vm284, 1, 0
        %v293 = vsel %vm285, 1, 0
        %v294 = vsel %vm286, 1, 0
        %v295 = vcvt.s32.f32 %v287
        %v296 = vcvt.s32.f32 %v288
        %v297 = vcvt.s32.f32 %v289
        %v298 = vcvt.s32.f32 %v290
        %v299 = vcvt.s32.f32 %v291
        %v300 = vcvt.s32.f32 %v292
        %v301 = vcvt.s32.f32 %v293
        %v302 = vcvt.s32.f32 %v294
        %v303 = vrot.slane %v295, 4
        %v304 = vadd.f32 %v295, %v303
        %v305 = vrot.slane %v304, 2
        %v306 = vadd.f32 %v304, %v305
        %v307 = vrot.slane %v306, 1
        %v308 = vadd.f32 %v306, %v307
        %v309 = vrot.slane %v296, 4
        %v310 = vadd.f32 %v296, %v309
        %v311 = vrot.slane %v310, 2
        %v312 = vadd.f32 %v310, %v311
        %v313 = vrot.slane %v312, 1
        %v314 = vadd.f32 %v312, %v313
        %v315 = vrot.slane %v297, 4
        %v316 = vadd.f32 %v297, %v315
        %v317 = vrot.slane %v316, 2
        %v318 = vadd.f32 %v316, %v317
        %v319 = vrot.slane %v318, 1
        %v320 = vadd.f32 %v318, %v319
        %v321 = vrot.slane %v298, 4
        %v322 = vadd.f32 %v298, %v321
        %v323 = vrot.slane %v322, 2
        %v324 = vadd.f32 %v322, %v323
        %v325 = vrot.slane %v324, 1
        %v326 = vadd.f32 %v324, %v325
        %v327 = vrot.slane %v299, 4
        %v328 = vadd.f32 %v299, %v327
        %v329 = vrot.slane %v328, 2
        %v330 = vadd.f32 %v328, %v329
        %v331 = vrot.slane %v330, 1
        %v332 = vadd.f32 %v330, %v331
        %v333 = vrot.slane %v300, 4
        %v334 = vadd.f32 %v300, %v333
        %v335 = vrot.slane %v334, 2
        %v336 = vadd.f32 %v334, %v335
        %v337 = vrot.slane %v336, 1
        %v338 = vadd.f32 %v336, %v337
        %v339 = vrot.slane %v301, 4
        %v340 = vadd.f32 %v301, %v339
        %v341 = vrot.slane %v340, 2
        %v342 = vadd.f32 %v340, %v341
        %v343 = vrot.slane %v342, 1
        %v344 = vadd.f32 %v342, %v343
        %v345 = vrot.slane %v302, 4
        %v346 = vadd.f32 %v302, %v345
        %v347 = vrot.slane %v346, 2
        %v348 = vadd.f32 %v346, %v347
        %v349 = vrot.slane %v348, 1
        %v350 = vadd.f32 %v348, %v349
        %v351 = vld [vmem:[#allocation2] sm:$0xff]
        %v352 = vld [vmem:[%s171] sm:$0xff]
        %v353 = vld [vmem:[%s171 + $0x8] sm:$0xff]
        %v354 = vld [vmem:[%s171 + $0x10] sm:$0xff]
        %v355 = vld [vmem:[%s171 + $0x18] sm:$0xff]
        %v356 = vld [vmem:[%s171 + $0x20] sm:$0xff]
        %v357 = vld [vmem:[%s171 + $0x28] sm:$0xff]
        %v358 = vld [vmem:[%s171 + $0x30] sm:$0xff]
        %v359 = vld [vmem:[%s171 + $0x38] sm:$0xff]
        %v360 = vld [vmem:[%s171 + $0x40] sm:$0xff]
        %v361 = vld [vmem:[%s171 + $0x48] sm:$0xff]
        %v362 = vld [vmem:[%s171 + $0x50] sm:$0xff]
        %v363 = vld [vmem:[%s171 + $0x58] sm:$0xff]
        %v364 = vld [vmem:[%s171 + $0x60] sm:$0xff]
        %v365 = vld [vmem:[%s171 + $0x68] sm:$0xff]
        %v366 = vld [vmem:[%s171 + $0x70] sm:$0xff]
        %v367 = vld [vmem:[%s171 + $0x78] sm:$0xff]
        %vm376 = vcmask 1041409
        %v377 = vsel %vm376, %v314, %v308
        %vm378 = vcmask 1042434
        %v379 = vsel %vm378, %v320, %v377
        %vm380 = vcmask 1043459
        %v381 = vsel %vm380, %v326, %v379
        %vm382 = vcmask 1044484
        %v383 = vsel %vm382, %v332, %v381
        %vm384 = vcmask 1045509
        %v385 = vsel %vm384, %v338, %v383
        %vm386 = vcmask 1046534
        %v387 = vsel %vm386, %v344, %v385
        %vm388 = vcmask 1047559
        %v389 = vsel %vm388, %v350, %v387
        %391 = vmatprep.subr.mxu0 0.0
        %392 = vmatpush1.msra.mxu0 %v352
        %393 = vmatprep.subr.mxu0 0.0
        %394 = vmatpush1.msra.mxu0 %v353
        %395 = vmatprep.subr.mxu0 0.0
        %396 = vmatpush1.msra.mxu0 %v354
        %397 = vmatprep.subr.mxu0 0.0
        %398 = vmatpush1.msra.mxu0 %v355
        %399 = vmatprep.subr.mxu0 0.0
        %400 = vmatpush1.msra.mxu0 %v356
        %401 = vmatprep.subr.mxu0 0.0
        %402 = vmatpush1.msra.mxu0 %v357
        %403 = vmatprep.subr.mxu0 0.0
        %404 = vmatpush1.msra.mxu0 %v358
        %405 = vmatprep.subr.mxu0 0.0
        %406 = vmatpush1.msra.mxu0 %v359
        %407 = vmatprep.subr.mxu0 0.0
        %408 = vmatpush1.msra.mxu0 %v360
        %409 = vmatprep.subr.mxu0 0.0
        %410 = vmatpush1.msra.mxu0 %v361
        %411 = vmatprep.subr.mxu0 0.0
        %412 = vmatpush1.msra.mxu0 %v362
        %413 = vmatprep.subr.mxu0 0.0
        %414 = vmatpush1.msra.mxu0 %v363
        %415 = vmatprep.subr.mxu0 0.0
        %416 = vmatpush1.msra.mxu0 %v364
        %417 = vmatprep.subr.mxu0 0.0
        %418 = vmatpush1.msra.mxu0 %v365
        %419 = vmatprep.subr.mxu0 0.0
        %420 = vmatpush1.msra.mxu0 %v366
        %421 = vmatprep.subr.mxu0 0.0
        %422 = vmatpush1.msra.mxu0 %v367
        %423 = vmatprep.subr.mxu0 0.0
        %424 = vmatpush1.msra.mxu0 0.0
        %425 = vmatprep.subr.mxu0 0.0
        %426 = vmatpush1.msra.mxu0 0.0
        %427 = vmatprep.subr.mxu0 0.0
        %428 = vmatpush1.msra.mxu0 0.0
        %429 = vmatprep.subr.mxu0 0.0
        %430 = vmatpush1.msra.mxu0 0.0
        %431 = vmatprep.subr.mxu0 0.0
        %432 = vmatpush1.msra.mxu0 0.0
        %433 = vmatprep.subr.mxu0 0.0
        %434 = vmatpush1.msra.mxu0 0.0
        %435 = vmatprep.subr.mxu0 0.0
        %436 = vmatpush1.msra.mxu0 0.0
        %437 = vmatprep.subr.mxu0 0.0
        %438 = vmatpush1.msra.mxu0 0.0
        %439 = vmatprep.subr.mxu0 0.0
        %440 = vmatpush1.msra.mxu0 0.0
        %441 = vmatprep.subr.mxu0 0.0
        %442 = vmatpush1.msra.mxu0 0.0
        %443 = vmatprep.subr.mxu0 0.0
        %444 = vmatpush1.msra.mxu0 0.0
        %445 = vmatprep.subr.mxu0 0.0
        %446 = vmatpush1.msra.mxu0 0.0
        %447 = vmatprep.subr.mxu0 0.0
        %448 = vmatpush1.msra.mxu0 0.0
        %449 = vmatprep.subr.mxu0 0.0
        %450 = vmatpush1.msra.mxu0 0.0
        %451 = vmatprep.subr.mxu0 0.0
        %452 = vmatpush1.msra.mxu0 0.0
        %453 = vmatprep.subr.mxu0 0.0
        %454 = vmatpush1.msra.mxu0 0.0
        %455 = vmatprep.mubr.f32.mxu0 0.0
        %456 = vmatmul.mubr.f32.gmra.mrb[0].mxu0 %v389
        %v457 = vpop.f32.mrb[0].mxu0
        %v458 = vadd.f32 0.0, %v457
        %v459 = vpop.f32.mrb[0].mxu0
        %460 = vdwg.mxu0
        %v461 = vadd.f32 %v351, %v458
        %462 = vst [vmem:[#allocation2] sm:$0xff] %v461
        %p463 = scmp.eq.s32.totalorder %s23, 3
        // Predicated region
        $region41: #{tpu_custom_call.1} parent=27 // pred_check
          %p464 = pneg %p463
        $region42: #{tpu_custom_call.1} parent=27 // pred_check_branch
          %466 = sbr.rel (%p464) target = $region44
        $region43: #{tpu_custom_call.1} parent=27 // pred_region
          %v467 = vld [vmem:[#allocation2] sm:$0xff]
          %v468 = vld [vmem:[#allocation3] sm:$0xff]
          %470 = vset.pattern.permute.xlu0 0
          %471 = vperm.xlu0 %470, %v468
          %v472 = vpop.permute.xlu0 %471
          %v474 = vmul.f32 %v467, %v472
          %475 = vst [vmem:[#allocation9] sm:$0xff] %v474
        $region44: #{tpu_custom_call.1} parent=27 // pred_fallthru
          _
        // Predicated region
        $region45: #{tpu_custom_call.1} parent=27 // pred_check
          %p476 = pneg %p100
        $region46: #{tpu_custom_call.1} parent=27 // pred_check_branch
          %478 = sbr.rel (%p476) target = $region48
        $region47: #{tpu_custom_call.1} parent=27 // pred_region
          %s480 = ssub.s32 128, 128
          %481 = vsyncadd [#allocation6], %s480
          %s482 = smul.addr %s22, 128
          %s483 = scalar_lea.hbm %s2, %s482
          %s485 = sshll.u32 [#allocation9], 4
          %s486 = int_to_ptr.vmem [resolvable:$true] %s485
          %488 = dma.vmem_to_hbm [thread:$0]  %s486, 128, %s483, [#allocation6]
        $region48: #{tpu_custom_call.1} parent=27 // pred_fallthru
          _
        // Predicated region
        $region49: #{tpu_custom_call.1} parent=27 // pred_check
          %p489 = pneg %p100
        $region50: #{tpu_custom_call.1} parent=27 // pred_check_branch
          %491 = sbr.rel (%p489) target = $region52
        $region51: #{tpu_custom_call.1} parent=27 // pred_region
          %492 = dma.done [#allocation6], 128
        $region52: #{tpu_custom_call.1} parent=27 // pred_fallthru
          _
      $region28: #{tpu_custom_call.1} parent=5 // pred_fallthru
        _
      %p493 = scmp.le.s32.totalorder 2, %s13
      // Predicated region
      $region53: #{tpu_custom_call.1} parent=5 // pred_check
        %p494 = pneg %p493
      $region54: #{tpu_custom_call.1} parent=5 // pred_check_branch
        %496 = sbr.rel (%p494) target = $region56
      $region55: #{tpu_custom_call.1} parent=5 // pred_region
        %s497 = ssub.s32 %s13, 2
      $region56: #{tpu_custom_call.1} parent=5 // pred_fallthru
        _
    $region6: #{tpu_custom_call.1} parent=1 // loop_footer
      %s17 = sadd.s32 1, %s13
    $region7: #{tpu_custom_call.1} parent=1 // loop_footer_branch
      %12 = sbr.rel target = $region3
    $region8: #{tpu_custom_call.1} parent=1 // loop_exit
      _
    %498 = vsyncpa [#allocation5], 1
    %s499 = scalar_lea.sflag [#allocation5], 1
    %500 = vsyncpa %s499, 1
    %501 = vsyncpa [#allocation8], 1
    %s502 = scalar_lea.sflag [#allocation8], 1
    %503 = vsyncpa %s502, 1
    %504 = vsyncpa [#allocation6], 1
    %s505 = scalar_lea.sflag [#allocation6], 1
    %506 = vsyncpa %s505, 1

</llo_original>
